<compile_context>
chip_gen: v7x
topology: tpu7x:2x2x1
jax: 0.10.0
libtpu: 0.0.40
codegen_flags: <defaults>
</compile_context>

<pallas_src>
import jax
import jax.numpy as jnp
import numpy as np
from jax import lax
from jax.experimental import pallas as pl
from jax.experimental.pallas import tpu as pltpu

_LANE = 128
_SUBLANE = 8
_HW_ALIGN = _LANE * _SUBLANE  # 1024


# ----------------------------------------------------------------------------
# Small helpers
# ----------------------------------------------------------------------------
def _vmem_capacity_bytes() -> int:
    try:
        info = pltpu.get_tpu_info()
        cap = getattr(info, "vmem_capacity_bytes", None)
        if cap:
            return int(cap)
    except Exception:
        pass
    return 64 * 1024 * 1024  # most conservative (v7x per-TC VMEM)


def _pad_reshape_hw(x, r_rows, dtype):
    """(N, HW) -> (N, R, 128), zero-padded along HW to R*128."""
    n, hw = x.shape
    x = x.astype(dtype)
    pad = r_rows * _LANE - hw
    if pad:
        x = jnp.pad(x, ((0, 0), (0, pad)))
    return x.reshape(n, r_rows, _LANE)


def _pick_row_tile(r_rows, per_col_bytes, budget_bytes, max_row_tile=None):
    """Largest multiple of 8 dividing R whose per-tile VMEM fits the budget."""
    best = _SUBLANE
    cap = r_rows if max_row_tile is None else min(r_rows, max_row_tile)
    for tr in range(_SUBLANE, cap + 1, _SUBLANE):
        if r_rows % tr == 0 and tr * _LANE * per_col_bytes <= budget_bytes:
            best = tr
    return best


def _pick_batch_block(batch, height, max_block=8):
    """Images per grid step for resize+blur (keeps >=2 grid steps when B>=2)."""
    cap = min(max_block, max(1, batch // 2))
    for d in range(cap, 0, -1):
        if batch % d == 0 and (d * height) % _SUBLANE == 0:
            return d
    return batch


# ----------------------------------------------------------------------------
# Kernel 1: Mahalanobis distance (VPU, dense (TR, 128) HW tiles)
# ----------------------------------------------------------------------------
def _make_mahalanobis_kernel(C, TR, n_acc):
    # Diagonal-major packed icov: rows for j-i == t start at offsets[t].
    offsets = []
    off = 0
    for t in range(C):
        offsets.append(off)
        off += C - t

    def kernel(emb_ref, mean_ref, icov_ref, out_ref, delta_ref):
        # emb_ref  : (C, TR, 128) storage dtype  (one image, one HW tile)
        # mean_ref : (C, TR, 128) storage dtype  (resident across batch steps)
        # icov_ref : (P, TR, 128) packed upper-tri, diag-major (resident across batch)
        # out_ref  : (TR, 128)    f32
        # delta_ref: (C, TR, 128) f32 VMEM scratch
        delta_ref[...] = (emb_ref[...].astype(jnp.float32)
                          - mean_ref[...].astype(jnp.float32))

        accs = [jnp.zeros((TR, _LANE), jnp.float32) for _ in range(n_acc)]

        def term(i, t, row):
            d_i = delta_ref[i]
            d_j = delta_ref[i + t]
            c = icov_ref[row].astype(jnp.float32)
            return d_i * d_j * c

        for t in range(C):            # python loop over diagonals -> trace size O(C)
            length = C - t
            base = offsets[t]
            n_blk = length // n_acc

            if n_blk > 0:
                def body(bi, carry, t=t, base=base):
                    i0 = bi * n_acc
                    carry = list(carry)
                    for a in range(n_acc):   # n_acc independent accumulation chains
                        carry[a] = carry[a] + term(i0 + a, t, base + i0 + a)
                    return tuple(carry)

                accs = list(lax.fori_loop(0, n_blk, body, tuple(accs)))

            for i in range(n_blk * n_acc, length):   # static remainder (< n_acc terms)
                accs[i % n_acc] = accs[i % n_acc] + term(i, t, base + i)

        total = accs[0]
        for a in accs[1:]:
            total = total + a
        out_ref[...] = jnp.sqrt(jnp.maximum(total, 0.0))

    return kernel


def mahalanobis_distance(embedding, mean_r, icov_r, *, storage_dtype=jnp.float32,
                         max_row_tile=None):
    """embedding (B,C,H,W), mean_r (C,R,128), icov_r (P,R,128) -> (B,H,W) f32."""
    B, C, H, W = embedding.shape
    HW = H * W
    P, R, lane = icov_r.shape
    assert lane == _LANE and mean_r.shape == (C, R, _LANE)
    assert P == C * (C + 1) // 2

    emb = _pad_reshape_hw(embedding.reshape(B * C, HW), R, storage_dtype)
    emb = emb.reshape(B, C, R, _LANE)

    isz = np.dtype(storage_dtype).itemsize
    # Per-HW-column bytes: double-buffered inputs/output + single delta scratch.
    per_col = 2 * (P + 2 * C) * isz + 2 * 4 + C * 4
    cap = _vmem_capacity_bytes()
    TR = _pick_row_tile(R, per_col, int(0.40 * cap), max_row_tile)
    n_acc = max(2, min(8, 16 // (TR // _SUBLANE)))
    needed = TR * _LANE * per_col
    vmem_limit = int(min(cap, max(needed + (8 << 20), 32 << 20)))

    dist = pl.pallas_call(
        _make_mahalanobis_kernel(C, TR, n_acc),
        out_shape=jax.ShapeDtypeStruct((B, R, _LANE), jnp.float32),
        grid=(R // TR, B),    # batch innermost -> mean/icov blocks stay resident
        in_specs=[
            pl.BlockSpec((None, C, TR, _LANE), lambda r, b: (b, 0, r, 0)),
            pl.BlockSpec((C, TR, _LANE), lambda r, b: (0, r, 0)),
            pl.BlockSpec((P, TR, _LANE), lambda r, b: (0, r, 0)),
        ],
        out_specs=pl.BlockSpec((None, TR, _LANE), lambda r, b: (b, r, 0)),
        scratch_shapes=[pltpu.VMEM((C, TR, _LANE), jnp.float32)],
        compiler_params=pltpu.CompilerParams(
            dimension_semantics=("parallel", "parallel"),
            vmem_limit_bytes=vmem_limit),
    )(emb, mean_r, icov_r)

    return dist.reshape(B, R * _LANE)[:, :HW].reshape(B, H, W)


# ----------------------------------------------------------------------------
# Kernel 2: fused bilinear upsample + Gaussian blur (MXU), batched over images
#           out[b] = M_h @ X[b] @ M_w^T   with   M_h = B_h@U_h,  M_w = B_w@U_w
# ----------------------------------------------------------------------------
def _make_resize_blur_kernel(BB, H):
    def kernel(x_ref, mwT_ref, mh_ref, out_ref):
        # x_ref: (BB*H, W)  mwT_ref: (W, Wout)  mh_ref: (Hout, H)  out_ref: (BB, Hout, Wout)
        y = jnp.dot(x_ref[...], mwT_ref[...], preferred_element_type=jnp.float32)
        y = y.astype(mh_ref.dtype)
        for b in range(BB):
            out_ref[b] = jnp.dot(mh_ref[...], y[b * H:(b + 1) * H, :],
                                 preferred_element_type=jnp.float32)
    return kernel


def resize_and_blur(dist, m_h, m_wT, *, matmul_dtype=jnp.float32, max_batch_block=8):
    """dist (B,H,W) -> (B,1,Hout,Wout)."""
    B, H, W = dist.shape
    Hout = m_h.shape[0]
    Wout = m_wT.shape[1]
    BB = _pick_batch_block(B, H, max_batch_block)

    x = dist.reshape(B * H, W).astype(matmul_dtype)
    mh = m_h.astype(matmul_dtype)
    mwT = m_wT.astype(matmul_dtype)

    out = pl.pallas_call(
        _make_resize_blur_kernel(BB, H),
        out_shape=jax.ShapeDtypeStruct((B, Hout, Wout), jnp.float32),
        grid=(B // BB,),
        in_specs=[
            pl.BlockSpec((BB * H, W), lambda i: (i, 0)),
            pl.BlockSpec((W, Wout), lambda i: (0, 0)),   # constant block index ->
            pl.BlockSpec((Hout, H), lambda i: (0, 0)),   # operators stay resident
        ],
        out_specs=pl.BlockSpec((BB, Hout, Wout), lambda i: (i, 0, 0)),
        compiler_params=pltpu.CompilerParams(dimension_semantics=("parallel",)),
    )(x, mwT, mh)
    return out[:, None]


# ----------------------------------------------------------------------------
# Host-side operator / statistics construction (data independent, cached)
# ----------------------------------------------------------------------------
def gaussian_1d(window_size, sigma):
    x = jnp.arange(window_size, dtype=jnp.float32) - window_size // 2
    if window_size % 2 == 0:
        x = x + 0.5
    g = jnp.exp(-(x ** 2) / (2.0 * sigma ** 2))
    return g / jnp.sum(g)


def resize_matrix(n_out, n_in):
    """Bilinear interpolation matrix matching F.interpolate(align_corners=False)."""
    scale = n_in / n_out
    i = jnp.arange(n_out, dtype=jnp.float32)
    src = jnp.maximum((i + 0.5) * scale - 0.5, 0.0)
    i0 = jnp.minimum(jnp.floor(src).astype(jnp.int32), n_in - 1)
    i1 = jnp.minimum(i0 + 1, n_in - 1)
    w1 = src - i0.astype(jnp.float32)
    w0 = 1.0 - w1
    return (jax.nn.one_hot(i0, n_in, dtype=jnp.float32) * w0[:, None]
            + jax.nn.one_hot(i1, n_in, dtype=jnp.float32) * w1[:, None])


def blur_matrix(n, k1d):
    """1-D cross-correlation with reflect 'same' padding as an (n, n) matrix."""
    ks = k1d.shape[0]
    pad = (ks - 1) // 2
    if n <= pad:
        raise ValueError(f"reflect padding requires output size > {pad}, got {n}")
    t = jnp.arange(n)[:, None] + jnp.arange(ks)[None, :] - pad
    t = jnp.where(t < 0, -t, t)
    t = jnp.where(t >= n, 2 * (n - 1) - t, t)
    onehot = jax.nn.one_hot(t, n, dtype=jnp.float32)                    # (n, ks, n)
    return jnp.einsum("k,nkr->nr", k1d.astype(jnp.float32), onehot,
                      precision=lax.Precision.HIGHEST)


def pack_icov_diag_major(inv_covariance, r_rows, storage_dtype):
    """(HW, C, C) -> (C*(C+1)//2, R, 128) symmetric upper-triangle pack.

    Diagonal-major row order (j-i == 0 rows first, then j-i == 1, ...) with the
    off-diagonal factor of 2 folded in, so d^T A d == sum_k packed[k]*d_i*d_j.
    Vectorized: one gather instead of ~P python slices.
    """
    hw, c, _ = inv_covariance.shape
    ii = np.concatenate([np.arange(c - t) for t in range(c)]).astype(np.int32)
    jj = np.concatenate([np.arange(c - t) + t for t in range(c)]).astype(np.int32)
    sym = inv_covariance[:, ii, jj] + inv_covariance[:, jj, ii]          # (HW, P)
    packed = sym * jnp.asarray(np.where(jj > ii, 1.0, 0.5), dtype=sym.dtype)
    packed = jnp.transpose(packed)                                       # (P, HW)
    return _pad_reshape_hw(packed, r_rows, storage_dtype)


class AnomalyMapGeneratorPallas:
    def __init__(self, image_size, sigma=4, storage_dtype=jnp.float32,
                 matmul_dtype=jnp.float32, max_row_tile=None, max_batch_block=8):
        self.image_size = tuple(image_size)
        # storage_dtype=jnp.bfloat16 halves the dominant inv-covariance/embedding
        # HBM streams (recommended on v5e/v7x); accumulation stays f32 either way.
        self.storage_dtype = storage_dtype
        # matmul_dtype=jnp.bfloat16 runs the fused resize+blur on the bf16 MXU path.
        self.matmul_dtype = matmul_dtype
        self.max_row_tile = max_row_tile
        self.max_batch_block = max_batch_block

        ks = 2 * int(4.0 * sigma + 0.5) + 1                 # 33 for sigma=4
        kx = gaussian_1d(ks, float(sigma))
        ky = gaussian_1d(ks, float(sigma))
        norm = jnp.sum(jnp.abs(jnp.outer(kx, ky)))          # normalize_kernel2d (== 1)
        h_out, w_out = self.image_size
        self.b_h = blur_matrix(h_out, kx / norm)            # (Hout, Hout)
        self.b_w = blur_matrix(w_out, ky)                   # (Wout, Wout)
        self._op_cache = {}                                 # (H, W) -> (M_h, M_w^T)
        self._stats_cache = None                            # strong refs -> no id reuse

    def _fused_operators(self, h, w):
        key = (h, w)
        if key not in self._op_cache:
            h_out, w_out = self.image_size
            u_h = resize_matrix(h_out, h)
            u_w = resize_matrix(w_out, w)
            m_h = jnp.dot(self.b_h, u_h, precision=lax.Precision.HIGHEST)
            m_wT = jnp.transpose(jnp.dot(self.b_w, u_w, precision=lax.Precision.HIGHEST))
            self._op_cache[key] = (m_h, m_wT)
        return self._op_cache[key]

    def _prepped_stats(self, mean, inv_covariance, r_rows):
        c = self._stats_cache
        if c is not None and c[0] is mean and c[1] is inv_covariance and c[2] == r_rows:
            return c[3], c[4]
        mean_r = _pad_reshape_hw(mean, r_rows, self.storage_dtype)
        icov_r = pack_icov_diag_major(inv_covariance, r_rows, self.storage_dtype)
        self._stats_cache = (mean, inv_covariance, r_rows, mean_r, icov_r)
        return mean_r, icov_r

    def __call__(self, embedding, mean, inv_covariance):
        _, _, h, w = embedding.shape
        hw = h * w
        r_rows = ((hw + _HW_ALIGN - 1) // _HW_ALIGN) * _SUBLANE   # HW padded to k*1024
        mean_r, icov_r = self._prepped_stats(mean, inv_covariance, r_rows)
        m_h, m_wT = self._fused_operators(h, w)
        dist = mahalanobis_distance(embedding, mean_r, icov_r,
                                    storage_dtype=self.storage_dtype,
                                    max_row_tile=self.max_row_tile)       # (B,H,W)
        return resize_and_blur(dist, m_h, m_wT, matmul_dtype=self.matmul_dtype,
                               max_batch_block=self.max_batch_block)      # (B,1,Ho,Wo)


# ----------------------------------------------------------------------------
# Pure-JAX reference (unfused operators) for a sanity check
# ----------------------------------------------------------------------------
def reference(embedding, mean, inv_covariance, u_h, u_w, b_h, b_w):
    hp = lax.Precision.HIGHEST
    b, c, h, w = embedding.shape
    emb3 = embedding.reshape(b, c, h * w)
    delta = jnp.transpose(emb3 - mean[None], (2, 0, 1))                  # (HW,B,C)
    dd = jnp.einsum("pbi,pij->pbj", delta, inv_covariance, precision=hp)
    dist = jnp.transpose(jnp.sum(dd * delta, axis=2), (1, 0))            # (B,HW)
    dist = jnp.sqrt(jnp.maximum(dist, 0.0)).reshape(b, h, w)
    up = jnp.einsum("oh,bhw,pw->bop", u_h, dist, u_w, precision=hp)
    sm = jnp.einsum("oh,bhw,pw->bop", b_h, up, b_w, precision=hp)
    return sm[:, None]


def _run_case(B, C, H, W, image_size, sigma, seed, storage_dtype, rtol, atol,
              max_row_tile=None):
    key = jax.random.PRNGKey(seed)
    k1, k2, k3 = jax.random.split(key, 3)
    embedding = jax.random.normal(k1, (B, C, H, W), dtype=jnp.float32)
    mean = jax.random.normal(k2, (C, H * W), dtype=jnp.float32)
    a = jax.random.normal(k3, (H * W, C, C), dtype=jnp.float32)
    inv_covariance = jnp.einsum("pij,pkj->pik", a, a) + 0.1 * jnp.eye(C)[None]

    gen = AnomalyMapGeneratorPallas(image_size=image_size, sigma=sigma,
                                    storage_dtype=storage_dtype,
                                    max_row_tile=max_row_tile)
    out = jax.block_until_ready(gen(embedding, mean, inv_covariance))
    assert out.shape == (B, 1, image_size[0], image_size[1])

    u_h = resize_matrix(image_size[0], H)
    u_w = resize_matrix(image_size[1], W)
    ref = reference(embedding, mean, inv_covariance, u_h, u_w, gen.b_h, gen.b_w)
    np.testing.assert_allclose(np.asarray(out), np.asarray(ref), rtol=rtol, atol=atol)


if __name__ == "__main__":
    # f32 storage, HW=256 padded to one (8,128) tile, grid (1, B).
    _run_case(B=2, C=4, H=16, W=16, image_size=(32, 32), sigma=4, seed=0,
              storage_dtype=jnp.float32, rtol=2e-3, atol=2e-3)
    # bf16 storage (halved icov/emb HBM traffic), padded HW (2304 -> 3072),
    # multi row-tile grid (3 x 3), odd C=9 exercising both the fori_loop blocked
    # path and the static remainder path of the quadratic-form loop.
    _run_case(B=3, C=9, H=48, W=48, image_size=(96, 96), sigma=4, seed=1,
              storage_dtype=jnp.bfloat16, rtol=2e-2, atol=2e-2, max_row_tile=8)
    print("KERNEL_OK")
</pallas_src>

<mosaic_0001>
module attributes {stable_mosaic.version = 11 : i64} {
  func.func @kernel(%arg0: i32, %arg1: i32, %arg2: memref<1x4x8x128xf32, #tpu.memory_space<vmem>>, %arg3: memref<4x8x128xf32, #tpu.memory_space<vmem>>, %arg4: memref<10x8x128xf32, #tpu.memory_space<vmem>>, %arg5: memref<1x8x128xf32, #tpu.memory_space<vmem>>, %arg6: memref<4x8x128xf32, #tpu.memory_space<vmem>>) attributes {dimension_semantics = [#tpu.dimension_semantics<parallel>, #tpu.dimension_semantics<parallel>], iteration_bounds = array<i64: 1, 2>, scalar_prefetch = 0 : i64, scratch_operands = 1 : i64, tpu.core_type = #tpu.core_type<tc>, window_params = [{transform_indices = @transform_0, window_bounds = array<i64: 1, 4, 8, 128>}, {transform_indices = @transform_1, window_bounds = array<i64: 4, 8, 128>}, {transform_indices = @transform_2, window_bounds = array<i64: 10, 8, 128>}, {transform_indices = @transform_3, window_bounds = array<i64: 1, 8, 128>}]} {
    %c0 = arith.constant 0 : index
    %c0_0 = arith.constant 0 : index
    %c0_1 = arith.constant 0 : index
    %c0_2 = arith.constant 0 : index
    %0 = vector.load %arg2[%c0, %c0_0, %c0_1, %c0_2] : memref<1x4x8x128xf32, #tpu.memory_space<vmem>>, vector<1x4x8x128xf32>
    %1 = vector.shape_cast %0 : vector<1x4x8x128xf32> to vector<4x8x128xf32>
    %c0_3 = arith.constant 0 : index
    %c0_4 = arith.constant 0 : index
    %c0_5 = arith.constant 0 : index
    %2 = vector.load %arg3[%c0_3, %c0_4, %c0_5] : memref<4x8x128xf32, #tpu.memory_space<vmem>>, vector<4x8x128xf32>
    %3 = arith.subf %1, %2 : vector<4x8x128xf32>
    %c0_6 = arith.constant 0 : index
    %c0_7 = arith.constant 0 : index
    %c0_8 = arith.constant 0 : index
    %4 = vector.load %arg6[%c0_6, %c0_7, %c0_8] : memref<4x8x128xf32, #tpu.memory_space<vmem>>, vector<4x8x128xf32>
    tpu.vector_store %arg6[%c0_6, %c0_7, %c0_8], %3 {strides = array<i32>} : memref<4x8x128xf32, #tpu.memory_space<vmem>>, vector<4x8x128xf32>,
    %cst = arith.constant 0.000000e+00 : f32
    %5 = vector.broadcast %cst : f32 to vector<8x128xf32>
    %cst_9 = arith.constant 0.000000e+00 : f32
    %6 = vector.broadcast %cst_9 : f32 to vector<8x128xf32>
    %cst_10 = arith.constant 0.000000e+00 : f32
    %7 = vector.broadcast %cst_10 : f32 to vector<8x128xf32>
    %cst_11 = arith.constant 0.000000e+00 : f32
    %8 = vector.broadcast %cst_11 : f32 to vector<8x128xf32>
    %cst_12 = arith.constant 0.000000e+00 : f32
    %9 = vector.broadcast %cst_12 : f32 to vector<8x128xf32>
    %cst_13 = arith.constant 0.000000e+00 : f32
    %10 = vector.broadcast %cst_13 : f32 to vector<8x128xf32>
    %cst_14 = arith.constant 0.000000e+00 : f32
    %11 = vector.broadcast %cst_14 : f32 to vector<8x128xf32>
    %cst_15 = arith.constant 0.000000e+00 : f32
    %12 = vector.broadcast %cst_15 : f32 to vector<8x128xf32>
    %c0_16 = arith.constant 0 : index
    %c0_17 = arith.constant 0 : index
    %c0_18 = arith.constant 0 : index
    %13 = vector.load %arg6[%c0_16, %c0_17, %c0_18] : memref<4x8x128xf32, #tpu.memory_space<vmem>>, vector<1x8x128xf32>
    %14 = vector.shape_cast %13 : vector<1x8x128xf32> to vector<8x128xf32>
    %c0_19 = arith.constant 0 : index
    %c0_20 = arith.constant 0 : index
    %c0_21 = arith.constant 0 : index
    %15 = vector.load %arg6[%c0_19, %c0_20, %c0_21] : memref<4x8x128xf32, #tpu.memory_space<vmem>>, vector<1x8x128xf32>
    %16 = vector.shape_cast %15 : vector<1x8x128xf32> to vector<8x128xf32>
    %c0_22 = arith.constant 0 : index
    %c0_23 = arith.constant 0 : index
    %c0_24 = arith.constant 0 : index
    %17 = vector.load %arg4[%c0_22, %c0_23, %c0_24] : memref<10x8x128xf32, #tpu.memory_space<vmem>>, vector<1x8x128xf32>
    %18 = vector.shape_cast %17 : vector<1x8x128xf32> to vector<8x128xf32>
    %19 = arith.mulf %14, %16 : vector<8x128xf32>
    %20 = arith.mulf %19, %18 : vector<8x128xf32>
    %21 = arith.addf %5, %20 : vector<8x128xf32>
    %c1 = arith.constant 1 : index
    %c0_25 = arith.constant 0 : index
    %c0_26 = arith.constant 0 : index
    %22 = vector.load %arg6[%c1, %c0_25, %c0_26] : memref<4x8x128xf32, #tpu.memory_space<vmem>>, vector<1x8x128xf32>
    %23 = vector.shape_cast %22 : vector<1x8x128xf32> to vector<8x128xf32>
    %c1_27 = arith.constant 1 : index
    %c0_28 = arith.constant 0 : index
    %c0_29 = arith.constant 0 : index
    %24 = vector.load %arg6[%c1_27, %c0_28, %c0_29] : memref<4x8x128xf32, #tpu.memory_space<vmem>>, vector<1x8x128xf32>
    %25 = vector.shape_cast %24 : vector<1x8x128xf32> to vector<8x128xf32>
    %c1_30 = arith.constant 1 : index
    %c0_31 = arith.constant 0 : index
    %c0_32 = arith.constant 0 : index
    %26 = vector.load %arg4[%c1_30, %c0_31, %c0_32] : memref<10x8x128xf32, #tpu.memory_space<vmem>>, vector<1x8x128xf32>
    %27 = vector.shape_cast %26 : vector<1x8x128xf32> to vector<8x128xf32>
    %28 = arith.mulf %23, %25 : vector<8x128xf32>
    %29 = arith.mulf %28, %27 : vector<8x128xf32>
    %30 = arith.addf %6, %29 : vector<8x128xf32>
    %c2 = arith.constant 2 : index
    %c0_33 = arith.constant 0 : index
    %c0_34 = arith.constant 0 : index
    %31 = vector.load %arg6[%c2, %c0_33, %c0_34] : memref<4x8x128xf32, #tpu.memory_space<vmem>>, vector<1x8x128xf32>
    %32 = vector.shape_cast %31 : vector<1x8x128xf32> to vector<8x128xf32>
    %c2_35 = arith.constant 2 : index
    %c0_36 = arith.constant 0 : index
    %c0_37 = arith.constant 0 : index
    %33 = vector.load %arg6[%c2_35, %c0_36, %c0_37] : memref<4x8x128xf32, #tpu.memory_space<vmem>>, vector<1x8x128xf32>
    %34 = vector.shape_cast %33 : vector<1x8x128xf32> to vector<8x128xf32>
    %c2_38 = arith.constant 2 : index
    %c0_39 = arith.constant 0 : index
    %c0_40 = arith.constant 0 : index
    %35 = vector.load %arg4[%c2_38, %c0_39, %c0_40] : memref<10x8x128xf32, #tpu.memory_space<vmem>>, vector<1x8x128xf32>
    %36 = vector.shape_cast %35 : vector<1x8x128xf32> to vector<8x128xf32>
    %37 = arith.mulf %32, %34 : vector<8x128xf32>
    %38 = arith.mulf %37, %36 : vector<8x128xf32>
    %39 = arith.addf %7, %38 : vector<8x128xf32>
    %c3 = arith.constant 3 : index
    %c0_41 = arith.constant 0 : index
    %c0_42 = arith.constant 0 : index
    %40 = vector.load %arg6[%c3, %c0_41, %c0_42] : memref<4x8x128xf32, #tpu.memory_space<vmem>>, vector<1x8x128xf32>
    %41 = vector.shape_cast %40 : vector<1x8x128xf32> to vector<8x128xf32>
    %c3_43 = arith.constant 3 : index
    %c0_44 = arith.constant 0 : index
    %c0_45 = arith.constant 0 : index
    %42 = vector.load %arg6[%c3_43, %c0_44, %c0_45] : memref<4x8x128xf32, #tpu.memory_space<vmem>>, vector<1x8x128xf32>
    %43 = vector.shape_cast %42 : vector<1x8x128xf32> to vector<8x128xf32>
    %c3_46 = arith.constant 3 : index
    %c0_47 = arith.constant 0 : index
    %c0_48 = arith.constant 0 : index
    %44 = vector.load %arg4[%c3_46, %c0_47, %c0_48] : memref<10x8x128xf32, #tpu.memory_space<vmem>>, vector<1x8x128xf32>
    %45 = vector.shape_cast %44 : vector<1x8x128xf32> to vector<8x128xf32>
    %46 = arith.mulf %41, %43 : vector<8x128xf32>
    %47 = arith.mulf %46, %45 : vector<8x128xf32>
    %48 = arith.addf %8, %47 : vector<8x128xf32>
    %c0_49 = arith.constant 0 : index
    %c0_50 = arith.constant 0 : index
    %c0_51 = arith.constant 0 : index
    %49 = vector.load %arg6[%c0_49, %c0_50, %c0_51] : memref<4x8x128xf32, #tpu.memory_space<vmem>>, vector<1x8x128xf32>
    %50 = vector.shape_cast %49 : vector<1x8x128xf32> to vector<8x128xf32>
    %c1_52 = arith.constant 1 : index
    %c0_53 = arith.constant 0 : index
    %c0_54 = arith.constant 0 : index
    %51 = vector.load %arg6[%c1_52, %c0_53, %c0_54] : memref<4x8x128xf32, #tpu.memory_space<vmem>>, vector<1x8x128xf32>
    %52 = vector.shape_cast %51 : vector<1x8x128xf32> to vector<8x128xf32>
    %c4 = arith.constant 4 : index
    %c0_55 = arith.constant 0 : index
    %c0_56 = arith.constant 0 : index
    %53 = vector.load %arg4[%c4, %c0_55, %c0_56] : memref<10x8x128xf32, #tpu.memory_space<vmem>>, vector<1x8x128xf32>
    %54 = vector.shape_cast %53 : vector<1x8x128xf32> to vector<8x128xf32>
    %55 = arith.mulf %50, %52 : vector<8x128xf32>
    %56 = arith.mulf %55, %54 : vector<8x128xf32>
    %57 = arith.addf %21, %56 : vector<8x128xf32>
    %c1_57 = arith.constant 1 : index
    %c0_58 = arith.constant 0 : index
    %c0_59 = arith.constant 0 : index
    %58 = vector.load %arg6[%c1_57, %c0_58, %c0_59] : memref<4x8x128xf32, #tpu.memory_space<vmem>>, vector<1x8x128xf32>
    %59 = vector.shape_cast %58 : vector<1x8x128xf32> to vector<8x128xf32>
    %c2_60 = arith.constant 2 : index
    %c0_61 = arith.constant 0 : index
    %c0_62 = arith.constant 0 : index
    %60 = vector.load %arg6[%c2_60, %c0_61, %c0_62] : memref<4x8x128xf32, #tpu.memory_space<vmem>>, vector<1x8x128xf32>
    %61 = vector.shape_cast %60 : vector<1x8x128xf32> to vector<8x128xf32>
    %c5 = arith.constant 5 : index
    %c0_63 = arith.constant 0 : index
    %c0_64 = arith.constant 0 : index
    %62 = vector.load %arg4[%c5, %c0_63, %c0_64] : memref<10x8x128xf32, #tpu.memory_space<vmem>>, vector<1x8x128xf32>
    %63 = vector.shape_cast %62 : vector<1x8x128xf32> to vector<8x128xf32>
    %64 = arith.mulf %59, %61 : vector<8x128xf32>
    %65 = arith.mulf %64, %63 : vector<8x128xf32>
    %66 = arith.addf %30, %65 : vector<8x128xf32>
    %c2_65 = arith.constant 2 : index
    %c0_66 = arith.constant 0 : index
    %c0_67 = arith.constant 0 : index
    %67 = vector.load %arg6[%c2_65, %c0_66, %c0_67] : memref<4x8x128xf32, #tpu.memory_space<vmem>>, vector<1x8x128xf32>
    %68 = vector.shape_cast %67 : vector<1x8x128xf32> to vector<8x128xf32>
    %c3_68 = arith.constant 3 : index
    %c0_69 = arith.constant 0 : index
    %c0_70 = arith.constant 0 : index
    %69 = vector.load %arg6[%c3_68, %c0_69, %c0_70] : memref<4x8x128xf32, #tpu.memory_space<vmem>>, vector<1x8x128xf32>
    %70 = vector.shape_cast %69 : vector<1x8x128xf32> to vector<8x128xf32>
    %c6 = arith.constant 6 : index
    %c0_71 = arith.constant 0 : index
    %c0_72 = arith.constant 0 : index
    %71 = vector.load %arg4[%c6, %c0_71, %c0_72] : memref<10x8x128xf32, #tpu.memory_space<vmem>>, vector<1x8x128xf32>
    %72 = vector.shape_cast %71 : vector<1x8x128xf32> to vector<8x128xf32>
    %73 = arith.mulf %68, %70 : vector<8x128xf32>
    %74 = arith.mulf %73, %72 : vector<8x128xf32>
    %75 = arith.addf %39, %74 : vector<8x128xf32>
    %c0_73 = arith.constant 0 : index
    %c0_74 = arith.constant 0 : index
    %c0_75 = arith.constant 0 : index
    %76 = vector.load %arg6[%c0_73, %c0_74, %c0_75] : memref<4x8x128xf32, #tpu.memory_space<vmem>>, vector<1x8x128xf32>
    %77 = vector.shape_cast %76 : vector<1x8x128xf32> to vector<8x128xf32>
    %c2_76 = arith.constant 2 : index
    %c0_77 = arith.constant 0 : index
    %c0_78 = arith.constant 0 : index
    %78 = vector.load %arg6[%c2_76, %c0_77, %c0_78] : memref<4x8x128xf32, #tpu.memory_space<vmem>>, vector<1x8x128xf32>
    %79 = vector.shape_cast %78 : vector<1x8x128xf32> to vector<8x128xf32>
    %c7 = arith.constant 7 : index
    %c0_79 = arith.constant 0 : index
    %c0_80 = arith.constant 0 : index
    %80 = vector.load %arg4[%c7, %c0_79, %c0_80] : memref<10x8x128xf32, #tpu.memory_space<vmem>>, vector<1x8x128xf32>
    %81 = vector.shape_cast %80 : vector<1x8x128xf32> to vector<8x128xf32>
    %82 = arith.mulf %77, %79 : vector<8x128xf32>
    %83 = arith.mulf %82, %81 : vector<8x128xf32>
    %84 = arith.addf %57, %83 : vector<8x128xf32>
    %c1_81 = arith.constant 1 : index
    %c0_82 = arith.constant 0 : index
    %c0_83 = arith.constant 0 : index
    %85 = vector.load %arg6[%c1_81, %c0_82, %c0_83] : memref<4x8x128xf32, #tpu.memory_space<vmem>>, vector<1x8x128xf32>
    %86 = vector.shape_cast %85 : vector<1x8x128xf32> to vector<8x128xf32>
    %c3_84 = arith.constant 3 : index
    %c0_85 = arith.constant 0 : index
    %c0_86 = arith.constant 0 : index
    %87 = vector.load %arg6[%c3_84, %c0_85, %c0_86] : memref<4x8x128xf32, #tpu.memory_space<vmem>>, vector<1x8x128xf32>
    %88 = vector.shape_cast %87 : vector<1x8x128xf32> to vector<8x128xf32>
    %c8 = arith.constant 8 : index
    %c0_87 = arith.constant 0 : index
    %c0_88 = arith.constant 0 : index
    %89 = vector.load %arg4[%c8, %c0_87, %c0_88] : memref<10x8x128xf32, #tpu.memory_space<vmem>>, vector<1x8x128xf32>
    %90 = vector.shape_cast %89 : vector<1x8x128xf32> to vector<8x128xf32>
    %91 = arith.mulf %86, %88 : vector<8x128xf32>
    %92 = arith.mulf %91, %90 : vector<8x128xf32>
    %93 = arith.addf %66, %92 : vector<8x128xf32>
    %c0_89 = arith.constant 0 : index
    %c0_90 = arith.constant 0 : index
    %c0_91 = arith.constant 0 : index
    %94 = vector.load %arg6[%c0_89, %c0_90, %c0_91] : memref<4x8x128xf32, #tpu.memory_space<vmem>>, vector<1x8x128xf32>
    %95 = vector.shape_cast %94 : vector<1x8x128xf32> to vector<8x128xf32>
    %c3_92 = arith.constant 3 : index
    %c0_93 = arith.constant 0 : index
    %c0_94 = arith.constant 0 : index
    %96 = vector.load %arg6[%c3_92, %c0_93, %c0_94] : memref<4x8x128xf32, #tpu.memory_space<vmem>>, vector<1x8x128xf32>
    %97 = vector.shape_cast %96 : vector<1x8x128xf32> to vector<8x128xf32>
    %c9 = arith.constant 9 : index
    %c0_95 = arith.constant 0 : index
    %c0_96 = arith.constant 0 : index
    %98 = vector.load %arg4[%c9, %c0_95, %c0_96] : memref<10x8x128xf32, #tpu.memory_space<vmem>>, vector<1x8x128xf32>
    %99 = vector.shape_cast %98 : vector<1x8x128xf32> to vector<8x128xf32>
    %100 = arith.mulf %95, %97 : vector<8x128xf32>
    %101 = arith.mulf %100, %99 : vector<8x128xf32>
    %102 = arith.addf %84, %101 : vector<8x128xf32>
    %103 = arith.addf %102, %93 : vector<8x128xf32>
    %104 = arith.addf %103, %75 : vector<8x128xf32>
    %105 = arith.addf %104, %48 : vector<8x128xf32>
    %106 = arith.addf %105, %9 : vector<8x128xf32>
    %107 = arith.addf %106, %10 : vector<8x128xf32>
    %108 = arith.addf %107, %11 : vector<8x128xf32>
    %109 = arith.addf %108, %12 : vector<8x128xf32>
    %cst_97 = arith.constant 0.000000e+00 : f32
    %110 = vector.broadcast %cst_97 : f32 to vector<8x128xf32>
    %111 = arith.maximumf %109, %110 : vector<8x128xf32>
    %112 = math.sqrt %111 : vector<8x128xf32>
    %c0_98 = arith.constant 0 : index
    %c0_99 = arith.constant 0 : index
    %c0_100 = arith.constant 0 : index
    %113 = vector.load %arg5[%c0_98, %c0_99, %c0_100] : memref<1x8x128xf32, #tpu.memory_space<vmem>>, vector<1x8x128xf32>
    %114 = vector.shape_cast %113 : vector<1x8x128xf32> to vector<8x128xf32>
    %115 = vector.shape_cast %112 : vector<8x128xf32> to vector<1x8x128xf32>
    tpu.vector_store %arg5[%c0_98, %c0_99, %c0_100], %115 {strides = array<i32>} : memref<1x8x128xf32, #tpu.memory_space<vmem>>, vector<1x8x128xf32>,
    return
  }
  func.func @transform_0(%arg0: i32, %arg1: i32) -> (i32, i32, i32, i32) {
    %c0_i32 = arith.constant 0 : i32
    %c0_i32_0 = arith.constant 0 : i32
    %c0_i32_1 = arith.constant 0 : i32
    return %arg1, %c0_i32, %arg0, %c0_i32_0 : i32, i32, i32, i32
  }
  func.func @transform_1(%arg0: i32, %arg1: i32) -> (i32, i32, i32) {
    %c0_i32 = arith.constant 0 : i32
    %c0_i32_0 = arith.constant 0 : i32
    %c0_i32_1 = arith.constant 0 : i32
    return %c0_i32, %arg0, %c0_i32_0 : i32, i32, i32
  }
  func.func @transform_2(%arg0: i32, %arg1: i32) -> (i32, i32, i32) {
    %c0_i32 = arith.constant 0 : i32
    %c0_i32_0 = arith.constant 0 : i32
    %c0_i32_1 = arith.constant 0 : i32
    return %c0_i32, %arg0, %c0_i32_0 : i32, i32, i32
  }
  func.func @transform_3(%arg0: i32, %arg1: i32) -> (i32, i32, i32) {
    %c0_i32 = arith.constant 0 : i32
    %c0_i32_0 = arith.constant 0 : i32
    return %arg1, %arg0, %c0_i32 : i32, i32, i32
  }
}

</mosaic_0001>

<llo_original>
// kernel: tpu_custom_call.1
$region0: #{tpu_custom_call.1}
  #allocation0 [shape = 'u32[]', space=smem, size = 0x4, offset = 0x4, fixed_abs, tag = 'smem constant byte address 0x4 - core index']
  #allocation1 [shape = 'u32[144,128]{1,0:T(1,128)}', space=vmem, size = 0x12000, scoped, tag = 'internal scratch']
  #allocation2 [shape = 'f32[4,8,128]{2,1,0:T(8,128)}', space=vmem, size = 0x4000, scoped, tag = 'scratch operand']
  %s0 = inlined_call_operand.hbm [shape: f32[2,4,8,128], index: 0, kind: input, shape index: {}]
  %s1 = inlined_call_operand.hbm [shape: f32[4,8,128], index: 1, kind: input, shape index: {}]
  %s2 = inlined_call_operand.hbm [shape: f32[10,8,128], index: 2, kind: input, shape index: {}]
  %s3 = inlined_call_operand.hbm [shape: f32[2,8,128], index: 3, kind: output, shape index: {}]
  %s4 = sld [smem:[#allocation0]]
  $region57: #{tpu_custom_call.1} parent=0
    _
  %s6 = ssub.s32 1, %s4
  %s7 = scalar_select 0, %s6, %s4
  $region1: #{tpu_custom_call.1} parent=0
    #allocation3 [shape = 'u8[32768]{0}', space=vmem, size = 0x8000, scoped, tag = 'input window, operand 0']
    #allocation4 [shape = 's32[2]{0}', space=sflag, size = 0x8, scoped, tag = 'scoped memory for tpu_custom_call.1']
    #allocation5 [shape = 's32[2]{0}', space=sflag, size = 0x8, scoped, tag = 'scoped memory for tpu_custom_call.1']
    #allocation6 [shape = 'u8[16384]{0}', space=vmem, size = 0x4000, scoped, tag = 'input window, operand 1, single buffered']
    #allocation7 [shape = 's32[1]{0}', space=sflag, size = 0x4, scoped, tag = 'scoped memory for tpu_custom_call.1']
    #allocation8 [shape = 'u8[40960]{0}', space=vmem, size = 0xa000, scoped, tag = 'input window, operand 2, single buffered']
    #allocation9 [shape = 'u8[8192]{0}', space=vmem, size = 0x2000, scoped, tag = 'output window, operand 0']
    %8 = vsyncpa [#allocation4], 0
    %s9 = scalar_lea.sflag [#allocation4], 1
    %10 = vsyncpa %s9, 0
    %11 = vsyncpa [#allocation7], 0
    %12 = vsyncpa [#allocation5], 0
    %s13 = scalar_lea.sflag [#allocation5], 1
    %14 = vsyncpa %s13, 0
    loop: start=0, step=1, limit=4
    $region2: #{tpu_custom_call.1} parent=1 // loop_pre_header
      _
    $region3: #{tpu_custom_call.1} parent=1 // loop_header
      %s16 = sphi 0, %s20
      %p17 = scmp.ge.s32.totalorder %s16, 4
      %s23 = sphi 0, %s35
      %s24 = sphi 0, %s31
      %s25 = sphi 0, %s23
      %s26 = sphi 0, %s24
      %s27 = sphi 0, %s25
      %s28 = sphi 0, %s26
      %s40 = sphi 0, %s42
      %s43 = sphi 0, %s40
      %s44 = sphi 0, %s43
      %s60 = sphi 0, %s44
      %s66 = sphi 0, %s68
      %s69 = sphi 0, %s66
      %s70 = sphi 0, %s69
      %s86 = sphi 0, %s70
      %s92 = sphi 0, %s94
      %s95 = sphi 0, %s92
      %s96 = sphi 0, %s95
      %s112 = sphi 0, %s96
      %s120 = sphi 0, %s122
      %s123 = sphi 0, %s120
      %s124 = sphi 0, %s123
      %s140 = sphi 0, %s124
    $region4: #{tpu_custom_call.1} parent=1 // loop_header_branch
      %19 = sbr.rel (%p17) target = $region8
    $region5: #{tpu_custom_call.1} parent=1 // loop_body
      %s21 = ssub.s32 %s16, 1
      %s22 = ssub.s32 %s16, 2
      %s29 = sadd.s32 1, %s24
      %p30 = scmp.ge.s32.totalorder %s29, 2
      %s31 = scalar_select %p30, 0, %s29
      %s32 = sadd.s32 1, %s23
      %s33 = scalar_select %p30, %s32, %s23
      %p34 = scmp.ge.s32.totalorder %s33, 1
      %s35 = scalar_select %p34, 0, %s33
      %s36 = ssub.s32 %s24, %s31
      %s37 = ssub.s32 %s23, %s35
      %s38 = sor.u32 %s36, %s37
      %p39 = scmp.eq.s32.totalorder %s38, 0
      %s41 = sadd.s32 %s40, 1
      %s42 = scalar_select %p39, %s40, %s41
      %p45 = pneg %p39
      %p46 = scmp.eq.s32.totalorder %s16, 1
      %p47 = por %p45, %p46
      %p48 = scmp.ne.s32.totalorder %s40, %s43
      %p49 = scmp.eq.s32.totalorder %s16, 0
      %p50 = por %p48, %p49
      %p51 = scmp.ne.s32.totalorder %s40, %s43
      %p52 = scmp.eq.s32.totalorder %s21, 1
      %p53 = por %p51, %p52
      %p54 = scmp.ne.s32.totalorder %s43, %s44
      %p55 = scmp.eq.s32.totalorder %s21, 0
      %p56 = por %p54, %p55
      %p57 = scmp.ne.s32.totalorder %s43, %s44
      %p58 = scmp.eq.s32.totalorder %s22, 1
      %p59 = por %p57, %p58
      %p61 = scmp.ne.s32.totalorder %s44, %s60
      %p62 = scmp.eq.s32.totalorder %s22, 0
      %p63 = por %p61, %p62
      %s64 = ssub.s32 %s23, %s35
      %p65 = scmp.eq.s32.totalorder %s64, 0
      %s67 = sadd.s32 %s66, 1
      %s68 = scalar_select %p65, %s66, %s67
      %p71 = pneg %p65
      %p72 = scmp.eq.s32.totalorder %s16, 1
      %p73 = por %p71, %p72
      %p74 = scmp.ne.s32.totalorder %s66, %s69
      %p75 = scmp.eq.s32.totalorder %s16, 0
      %p76 = por %p74, %p75
      %p77 = scmp.ne.s32.totalorder %s66, %s69
      %p78 = scmp.eq.s32.totalorder %s21, 1
      %p79 = por %p77, %p78
      %p80 = scmp.ne.s32.totalorder %s69, %s70
      %p81 = scmp.eq.s32.totalorder %s21, 0
      %p82 = por %p80, %p81
      %p83 = scmp.ne.s32.totalorder %s69, %s70
      %p84 = scmp.eq.s32.totalorder %s22, 1
      %p85 = por %p83, %p84
      %p87 = scmp.ne.s32.totalorder %s70, %s86
      %p88 = scmp.eq.s32.totalorder %s22, 0
      %p89 = por %p87, %p88
      %s90 = ssub.s32 %s23, %s35
      %p91 = scmp.eq.s32.totalorder %s90, 0
      %s93 = sadd.s32 %s92, 1
      %s94 = scalar_select %p91, %s92, %s93
      %p97 = pneg %p91
      %p98 = scmp.eq.s32.totalorder %s16, 1
      %p99 = por %p97, %p98
      %p100 = scmp.ne.s32.totalorder %s92, %s95
      %p101 = scmp.eq.s32.totalorder %s16, 0
      %p102 = por %p100, %p101
      %p103 = scmp.ne.s32.totalorder %s92, %s95
      %p104 = scmp.eq.s32.totalorder %s21, 1
      %p105 = por %p103, %p104
      %p106 = scmp.ne.s32.totalorder %s95, %s96
      %p107 = scmp.eq.s32.totalorder %s21, 0
      %p108 = por %p106, %p107
      %p109 = scmp.ne.s32.totalorder %s95, %s96
      %p110 = scmp.eq.s32.totalorder %s22, 1
      %p111 = por %p109, %p110
      %p113 = scmp.ne.s32.totalorder %s96, %s112
      %p114 = scmp.eq.s32.totalorder %s22, 0
      %p115 = por %p113, %p114
      %s116 = ssub.s32 %s24, %s31
      %s117 = ssub.s32 %s23, %s35
      %s118 = sor.u32 %s116, %s117
      %p119 = scmp.eq.s32.totalorder %s118, 0
      %s121 = sadd.s32 %s120, 1
      %s122 = scalar_select %p119, %s120, %s121
      %p125 = pneg %p119
      %p126 = scmp.eq.s32.totalorder %s16, 1
      %p127 = por %p125, %p126
      %p128 = scmp.ne.s32.totalorder %s120, %s123
      %p129 = scmp.eq.s32.totalorder %s16, 0
      %p130 = por %p128, %p129
      %p131 = scmp.ne.s32.totalorder %s120, %s123
      %p132 = scmp.eq.s32.totalorder %s21, 1
      %p133 = por %p131, %p132
      %p134 = scmp.ne.s32.totalorder %s123, %s124
      %p135 = scmp.eq.s32.totalorder %s21, 0
      %p136 = por %p134, %p135
      %p137 = scmp.ne.s32.totalorder %s123, %s124
      %p138 = scmp.eq.s32.totalorder %s22, 1
      %p139 = por %p137, %p138
      %p141 = scmp.ne.s32.totalorder %s124, %s140
      %p142 = scmp.eq.s32.totalorder %s22, 0
      %p143 = por %p141, %p142
      %p144 = scmp.le.s32.totalorder 1, %s16
      %p145 = scmp.lt.s32.totalorder %s16, 3
      %p146 = pnand %p144, %p145
      %p147 = pneg %p146
      // Predicated region
      $region9: #{tpu_custom_call.1} parent=5 // pred_check
        _
      $region10: #{tpu_custom_call.1} parent=5 // pred_check_branch
        %149 = sbr.rel (%p146) target = $region12
      $region11: #{tpu_custom_call.1} parent=5 // pred_region
        %s150 = ssub.s32 %s16, 1
        // Predicated region
        $region13: #{tpu_custom_call.1} parent=11 // pred_check
          %p151 = pneg %p82
        $region14: #{tpu_custom_call.1} parent=11 // pred_check_branch
          %153 = sbr.rel (%p151) target = $region16
        $region15: #{tpu_custom_call.1} parent=11 // pred_region
          %s155 = ssub.s32 512, 512
          %156 = vsyncadd [#allocation7], %s155
          %s157 = smul.addr %s25, 128
          %s158 = scalar_lea.hbm %s1, %s157
          %s159 = sshll.u32 [#allocation6], 4
          %s160 = int_to_ptr.vmem [resolvable:$true] %s159
          %165 = dma.hbm_to_vmem [thread:$0]  %s158, 512, %s160, [#allocation7], 128, 128, 8
        $region16: #{tpu_custom_call.1} parent=11 // pred_fallthru
          _
        // Predicated region
        $region17: #{tpu_custom_call.1} parent=11 // pred_check
          %p166 = pneg %p108
        $region18: #{tpu_custom_call.1} parent=11 // pred_check_branch
          %168 = sbr.rel (%p166) target = $region20
        $region19: #{tpu_custom_call.1} parent=11 // pred_region
          %s170 = ssub.s32 1280, 1280
          %171 = vsyncadd [#allocation7], %s170
          %s172 = smul.addr %s25, 128
          %s173 = scalar_lea.hbm %s2, %s172
          %s174 = sshll.u32 [#allocation8], 4
          %s175 = int_to_ptr.vmem [resolvable:$true] %s174
          %180 = dma.hbm_to_vmem [thread:$0]  %s173, 1280, %s175, [#allocation7], 128, 128, 8
        $region20: #{tpu_custom_call.1} parent=11 // pred_fallthru
          _
      $region12: #{tpu_custom_call.1} parent=5 // pred_fallthru
        _
      %p181 = scmp.lt.s32.totalorder %s16, 2
      // Predicated region
      $region21: #{tpu_custom_call.1} parent=5 // pred_check
        %p182 = pneg %p181
      $region22: #{tpu_custom_call.1} parent=5 // pred_check_branch
        %184 = sbr.rel (%p182) target = $region24
      $region23: #{tpu_custom_call.1} parent=5 // pred_region
        // Predicated region
        $region25: #{tpu_custom_call.1} parent=23 // pred_check
          %p185 = pneg %p50
        $region26: #{tpu_custom_call.1} parent=23 // pred_check_branch
          %187 = sbr.rel (%p185) target = $region28
        $region27: #{tpu_custom_call.1} parent=23 // pred_region
          %s188 = sand.u32 %s40, 1
          %s189 = scalar_lea.sflag [#allocation4], %s188
          %s190 = sand.u32 %s40, 1
          %s191 = smul.addr %s190, 32
          %s192 = scalar_lea.vmem [#allocation3], %s191
          %s194 = ssub.s32 512, 512
          %195 = vsyncadd %s189, %s194
          %s196 = smul.addr %s24, 4
          %s197 = sadd.s32 %s23, %s196
          %s198 = smul.addr %s197, 128
          %s199 = scalar_lea.hbm %s0, %s198
          %s200 = sshll.u32 %s192, 4
          %s201 = int_to_ptr.vmem [resolvable:$true] %s200
          %206 = dma.hbm_to_vmem [thread:$0]  %s199, 512, %s201, %s189, 128, 128, 8
        $region28: #{tpu_custom_call.1} parent=23 // pred_fallthru
          _
      $region24: #{tpu_custom_call.1} parent=5 // pred_fallthru
        _
      %p207 = scmp.le.s32.totalorder 1, %s16
      %p208 = scmp.lt.s32.totalorder %s16, 3
      %p209 = pnand %p207, %p208
      %p210 = pneg %p209
      // Predicated region
      $region29: #{tpu_custom_call.1} parent=5 // pred_check
        _
      $region30: #{tpu_custom_call.1} parent=5 // pred_check_branch
        %212 = sbr.rel (%p209) target = $region32
      $region31: #{tpu_custom_call.1} parent=5 // pred_region
        %s213 = ssub.s32 %s16, 1
        %s214 = sand.u32 %s43, 1
        %s215 = scalar_lea.sflag [#allocation4], %s214
        %s216 = sand.u32 %s43, 1
        %s217 = smul.addr %s216, 32
        %s218 = scalar_lea.vmem [#allocation3], %s217
        // Predicated region
        $region33: #{tpu_custom_call.1} parent=31 // pred_check
          %p219 = pneg %p56
        $region34: #{tpu_custom_call.1} parent=31 // pred_check_branch
          %221 = sbr.rel (%p219) target = $region36
        $region35: #{tpu_custom_call.1} parent=31 // pred_region
          %222 = dma.done %s215, 512
        $region36: #{tpu_custom_call.1} parent=31 // pred_fallthru
          _
        // Predicated region
        $region37: #{tpu_custom_call.1} parent=31 // pred_check
          %p223 = pneg %p82
        $region38: #{tpu_custom_call.1} parent=31 // pred_check_branch
          %225 = sbr.rel (%p223) target = $region40
        $region39: #{tpu_custom_call.1} parent=31 // pred_region
          %226 = dma.done [#allocation7], 512
        $region40: #{tpu_custom_call.1} parent=31 // pred_fallthru
          _
        // Predicated region
        $region41: #{tpu_custom_call.1} parent=31 // pred_check
          %p227 = pneg %p108
        $region42: #{tpu_custom_call.1} parent=31 // pred_check_branch
          %229 = sbr.rel (%p227) target = $region44
        $region43: #{tpu_custom_call.1} parent=31 // pred_region
          %230 = dma.done [#allocation7], 1280
        $region44: #{tpu_custom_call.1} parent=31 // pred_fallthru
          _
        %s231 = sand.u32 %s43, 1
        %s232 = scalar_lea.sflag [#allocation4], %s231
        %s233 = sand.u32 %s43, 1
        %s234 = smul.addr %s233, 32
        %s235 = scalar_lea.vmem [#allocation3], %s234
        %p236 = pneg %p56
        %p237 = pneg %p53
        %p238 = pneg %p82
        %p239 = pneg %p79
        %p240 = pneg %p108
        %p241 = pneg %p105
        %p242 = pneg %p136
        %p243 = pneg %p133
        %s244 = sand.u32 %s123, 1
        %s245 = scalar_lea.sflag [#allocation5], %s244
        %s246 = sand.u32 %s123, 1
        %s247 = smul.addr %s246, 8
        %s248 = scalar_lea.vmem [#allocation9], %s247
        %v249 = vld [vmem:[%s218] sm:$0xff]
        %v250 = vld [vmem:[%s218 + $0x8] sm:$0xff]
        %v251 = vld [vmem:[%s218 + $0x10] sm:$0xff]
        %v252 = vld [vmem:[%s218 + $0x18] sm:$0xff]
        %v253 = vld [vmem:[#allocation6] sm:$0xff]
        %v254 = vld [vmem:[#allocation6 + $0x8] sm:$0xff]
        %v255 = vld [vmem:[#allocation6 + $0x10] sm:$0xff]
        %v256 = vld [vmem:[#allocation6 + $0x18] sm:$0xff]
        %v257 = vsub.f32 %v249, %v253
        %v258 = vsub.f32 %v250, %v254
        %v259 = vsub.f32 %v251, %v255
        %v260 = vsub.f32 %v252, %v256
        %261 = vst [vmem:[#allocation2] sm:$0xff] %v257
        %262 = vst [vmem:[#allocation2 + $0x8] sm:$0xff] %v258
        %263 = vst [vmem:[#allocation2 + $0x10] sm:$0xff] %v259
        %264 = vst [vmem:[#allocation2 + $0x18] sm:$0xff] %v260
        %v265 = vld [vmem:[#allocation2] sm:$0xff]
        %v266 = vld [vmem:[#allocation8] sm:$0xff]
        %v267 = vmul.f32 %v265, %v265
        %v268 = vmul.f32 %v267, %v266
        %v269 = vadd.f32 %v268, 0.0
        %s270 = scalar_lea.vmem [#allocation2], 8
        %v271 = vld [vmem:[%s270] sm:$0xff]
        %s272 = scalar_lea.vmem [#allocation8], 8
        %v273 = vld [vmem:[%s272] sm:$0xff]
        %v274 = vmul.f32 %v271, %v271
        %v275 = vmul.f32 %v274, %v273
        %v276 = vadd.f32 %v275, 0.0
        %s277 = scalar_lea.vmem [#allocation2], 16
        %v278 = vld [vmem:[%s277] sm:$0xff]
        %s279 = scalar_lea.vmem [#allocation8], 16
        %v280 = vld [vmem:[%s279] sm:$0xff]
        %v281 = vmul.f32 %v278, %v278
        %v282 = vmul.f32 %v281, %v280
        %v283 = vadd.f32 %v282, 0.0
        %s284 = scalar_lea.vmem [#allocation2], 24
        %v285 = vld [vmem:[%s284] sm:$0xff]
        %s286 = scalar_lea.vmem [#allocation8], 24
        %v287 = vld [vmem:[%s286] sm:$0xff]
        %v288 = vmul.f32 %v285, %v285
        %v289 = vmul.f32 %v288, %v287
        %v290 = vadd.f32 %v289, 0.0
        %s291 = scalar_lea.vmem [#allocation8], 32
        %v292 = vld [vmem:[%s291] sm:$0xff]
        %v293 = vmul.f32 %v265, %v271
        %v294 = vmul.f32 %v293, %v292
        %v295 = vadd.f32 %v269, %v294
        %s296 = scalar_lea.vmem [#allocation8], 40
        %v297 = vld [vmem:[%s296] sm:$0xff]
        %v298 = vmul.f32 %v271, %v278
        %v299 = vmul.f32 %v298, %v297
        %v300 = vadd.f32 %v276, %v299
        %s301 = scalar_lea.vmem [#allocation8], 48
        %v302 = vld [vmem:[%s301] sm:$0xff]
        %v303 = vmul.f32 %v278, %v285
        %v304 = vmul.f32 %v303, %v302
        %v305 = vadd.f32 %v283, %v304
        %s306 = scalar_lea.vmem [#allocation8], 56
        %v307 = vld [vmem:[%s306] sm:$0xff]
        %v308 = vmul.f32 %v265, %v278
        %v309 = vmul.f32 %v308, %v307
        %v310 = vadd.f32 %v295, %v309
        %s311 = scalar_lea.vmem [#allocation8], 64
        %v312 = vld [vmem:[%s311] sm:$0xff]
        %v313 = vmul.f32 %v271, %v285
        %v314 = vmul.f32 %v313, %v312
        %v315 = vadd.f32 %v300, %v314
        %s316 = scalar_lea.vmem [#allocation8], 72
        %v317 = vld [vmem:[%s316] sm:$0xff]
        %v318 = vmul.f32 %v265, %v285
        %v319 = vmul.f32 %v318, %v317
        %v320 = vadd.f32 %v310, %v319
        %v321 = vadd.f32 %v320, %v315
        %v322 = vadd.f32 %v321, %v305
        %v323 = vadd.f32 %v322, %v290
        %v324 = vadd.f32 %v323, 0.0
        %v325 = vadd.f32 %v324, 0.0
        %v326 = vadd.f32 %v325, 0.0
        %v327 = vadd.f32 %v326, 0.0
        %v328 = vmax.f32 %v327, 0.0
        %v329 = vrsqrt.pop %v328
        %v330 = vmul.f32 %v328, %v329
        %vm331 = vcmp.eq.f32.partialorder %v328, inf
        %v332 = vsel %vm331, %v328, %v330
        %vm333 = vcmp.eq.f32.partialorder %v328, 0.0
        %v334 = vand.u32 %v328, 2147483648
        %v335 = vsel %vm333, %v334, %v332
        %336 = vst [vmem:[%s248] sm:$0xff] %v335
        %s337 = sand.u32 %s123, 1
        %s338 = scalar_lea.sflag [#allocation5], %s337
        %s339 = sand.u32 %s123, 1
        %s340 = smul.addr %s339, 8
        %s341 = scalar_lea.vmem [#allocation9], %s340
        // Predicated region
        $region45: #{tpu_custom_call.1} parent=31 // pred_check
          %p342 = pneg %p133
        $region46: #{tpu_custom_call.1} parent=31 // pred_check_branch
          %344 = sbr.rel (%p342) target = $region48
        $region47: #{tpu_custom_call.1} parent=31 // pred_region
          %s346 = ssub.s32 128, 128
          %347 = vsyncadd %s338, %s346
          %s348 = sadd.s32 %s25, %s26
          %s349 = smul.addr %s348, 128
          %s350 = scalar_lea.hbm %s3, %s349
          %s352 = sshll.u32 %s341, 4
          %s353 = int_to_ptr.vmem [resolvable:$true] %s352
          %355 = dma.vmem_to_hbm [thread:$0]  %s353, 128, %s350, %s338
        $region48: #{tpu_custom_call.1} parent=31 // pred_fallthru
          _
      $region32: #{tpu_custom_call.1} parent=5 // pred_fallthru
        _
      %p356 = scmp.le.s32.totalorder 2, %s16
      // Predicated region
      $region49: #{tpu_custom_call.1} parent=5 // pred_check
        %p357 = pneg %p356
      $region50: #{tpu_custom_call.1} parent=5 // pred_check_branch
        %359 = sbr.rel (%p357) target = $region52
      $region51: #{tpu_custom_call.1} parent=5 // pred_region
        %s360 = ssub.s32 %s16, 2
        // Predicated region
        $region53: #{tpu_custom_call.1} parent=51 // pred_check
          %p361 = pneg %p139
        $region54: #{tpu_custom_call.1} parent=51 // pred_check_branch
          %363 = sbr.rel (%p361) target = $region56
        $region55: #{tpu_custom_call.1} parent=51 // pred_region
          %s364 = sand.u32 %s124, 1
          %s365 = scalar_lea.sflag [#allocation5], %s364
          %s366 = sand.u32 %s124, 1
          %s367 = smul.addr %s366, 8
          %s368 = scalar_lea.vmem [#allocation9], %s367
          %369 = dma.done %s365, 128
        $region56: #{tpu_custom_call.1} parent=51 // pred_fallthru
          _
      $region52: #{tpu_custom_call.1} parent=5 // pred_fallthru
        _
    $region6: #{tpu_custom_call.1} parent=1 // loop_footer
      %s20 = sadd.s32 1, %s16
    $region7: #{tpu_custom_call.1} parent=1 // loop_footer_branch
      %15 = sbr.rel target = $region3
    $region8: #{tpu_custom_call.1} parent=1 // loop_exit
      _
    %370 = vsyncpa [#allocation4], 1
    %s371 = scalar_lea.sflag [#allocation4], 1
    %372 = vsyncpa %s371, 1
    %373 = vsyncpa [#allocation7], 1
    %374 = vsyncpa [#allocation5], 1
    %s375 = scalar_lea.sflag [#allocation5], 1
    %376 = vsyncpa %s375, 1

</llo_original>
